<compile_context>
chip_gen: v7x
topology: tpu7x:2x2x1
jax: 0.10.0
libtpu: 0.0.40
codegen_flags: <defaults>
</compile_context>

<pallas_src>
import math
import numpy as np
import jax
import jax.numpy as jnp
from jax.experimental import pallas as pl
from jax.experimental.pallas import tpu as pltpu


def _generate_lc2lcm_indices(lmax: int, cmax: int) -> np.ndarray:
    # lc -> lcm : e.g. lmax=1, cmax=2: [0, 1, 2, 2, 2, 3, 3, 3]
    idx = [l * cmax + c
           for l in range(lmax + 1)
           for c in range(cmax)
           for _ in range(2 * l + 1)]
    return np.asarray(idx, dtype=np.int32)


def _generate_m2lcm_indices(lmax: int, cmax: int) -> np.ndarray:
    # m -> lcm : e.g. lmax=1, cmax=2: [0, 0, 1, 2, 3, 1, 2, 3]
    idx = [l * l + m
           for l in range(lmax + 1)
           for _ in range(cmax)
           for m in range(2 * l + 1)]
    return np.asarray(idx, dtype=np.int32)


def _round_up(x: int, m: int) -> int:
    return ((x + m - 1) // m) * m


def _broadcast_kernel(x_ref, p_ref, o_ref):
    # One-hot projection on the MXU: out = x @ P (exact gather along last dim).
    o_ref[...] = jnp.dot(
        x_ref[...], p_ref[...], preferred_element_type=jnp.float32
    ).astype(o_ref.dtype)


class BroadcastGTOTensor:
    """JAX/Pallas port of the PyTorch BroadcastGTOTensor module."""

    _TARGET_STEP_BYTES = 12 << 20   # in-tile + out-tile bytes per grid step
    _MAX_TM = 8192                  # cap on packed rows per tile (multiple of 8)
    _MAX_G = 32                     # cap on packing factor (MXU waste ~ G)
    _MAX_LANES = 4096               # cap on packed output lane width
    _FAST_PATH_BYTES = 32 << 10     # below this output size, XLA gather wins

    def __init__(self, lmax: int, cmax: int, src: str = "lc", dst: str = "lcm"):
        assert src in ("lc", "m"), "src must be 'lc' or 'm'"
        assert dst == "lcm", "dst must be 'lcm'"
        self.src = src
        self.dst = dst
        self.lmax = lmax
        self.cmax = cmax
        if src == "lc":
            self.src_dim = (lmax + 1) * cmax
            indices = _generate_lc2lcm_indices(lmax, cmax)
        else:
            self.src_dim = (lmax + 1) ** 2
            indices = _generate_m2lcm_indices(lmax, cmax)
        self.dst_dim = (lmax + 1) ** 2 * cmax
        self.indices = jnp.asarray(indices)

        # ---- packing factor G -------------------------------------------
        # Prefer G making BOTH G*src_dim and G*dst_dim multiples of 128
        # (lane-dense input AND output tiles); else lane-dense output only;
        # else pad P's columns with zeros up to the next 128 multiple.
        g_dst = 128 // math.gcd(self.dst_dim, 128)
        g_src = 128 // math.gcd(self.src_dim, 128)
        g_both = g_dst * g_src // math.gcd(g_dst, g_src)

        def _fits(g):
            return (g <= self._MAX_G
                    and _round_up(g * self.dst_dim, 128) <= self._MAX_LANES)

        if _fits(g_both):
            g = g_both
        elif _fits(g_dst):
            g = g_dst
        else:
            # Fallback: pick the G with the least relative zero-column padding.
            g, best_score = 1, None
            for cand in range(1, self._MAX_G + 1):
                dp = cand * self.dst_dim
                dpp = _round_up(dp, 128)
                if dpp > self._MAX_LANES:
                    break
                score = dpp / dp
                if best_score is None or score < best_score - 1e-9:
                    g, best_score = cand, score
        # Cheap bump so dst_p hits 256 (full v6e/v7x MXU width) when exact.
        if ((g * self.dst_dim) % 128 == 0 and (g * self.dst_dim) % 256 != 0
                and _fits(2 * g)):
            g = 2 * g

        self.pack = g
        self.src_p = g * self.src_dim
        self.dst_p = _round_up(g * self.dst_dim, 128)   # always lane-dense
        self.pad_cols = self.dst_p - g * self.dst_dim   # rare fallback only

        # Constant block-diagonal one-hot projection (the module "buffer"):
        # P[g*src_dim + indices[j], g*dst_dim + j] = 1, trailing cols zero.
        onehot = np.zeros((self.src_dim, self.dst_dim), dtype=np.float32)
        onehot[np.asarray(indices), np.arange(self.dst_dim)] = 1.0
        packed = np.zeros((self.src_p, self.dst_p), dtype=np.float32)
        for gg in range(g):
            packed[gg * self.src_dim:(gg + 1) * self.src_dim,
                   gg * self.dst_dim:(gg + 1) * self.dst_dim] = onehot
        self.onehot_packed = jnp.asarray(packed)

    def __call__(self, x: jax.Array) -> jax.Array:
        assert x.shape[-1] == self.src_dim, (
            f"Input dimension mismatch! Should be {self.src_dim}, "
            f"but got {x.shape[-1]} instead!"
        )
        if self.src == self.dst:
            return x

        lead = x.shape[:-1]
        n_rows = int(np.prod(lead)) if lead else 1
        itemsize = jnp.dtype(x.dtype).itemsize

        # ---- small-input fast path: fused XLA gather beats a kernel launch.
        if (n_rows * self.dst_dim * itemsize <= self._FAST_PATH_BYTES
                or n_rows < self.pack):
            return jnp.take(x, self.indices, axis=-1)

        G = self.pack
        src_p, dst_p = self.src_p, self.dst_p

        x2 = x.reshape(n_rows, self.src_dim)
        # Pad rows only to a multiple of G (<= G-1 rows, misaligned case only).
        # Tile alignment is handled by the cdiv grid + Pallas masking of the
        # partial last block -> no extra HBM pass in the aligned case.
        n_rows_g = _round_up(n_rows, G)
        if n_rows_g != n_rows:
            x2 = jnp.pad(x2, ((0, n_rows_g - n_rows), (0, 0)))
        n_packed = n_rows_g // G
        xp = x2.reshape(n_packed, src_p)   # free reshape (contiguous)

        # ---- packed-row tile size (multiple of 8 sublanes) ----------------
        row_bytes = (src_p + dst_p) * itemsize
        tm = self._TARGET_STEP_BYTES // row_bytes
        tm = max(8, min(self._MAX_TM, (tm // 8) * 8))
        # Keep >=2 grid steps (second TensorCore on v7x) and don't over-pad
        # moderate inputs.
        if n_packed >= 16:
            tm = min(tm, _round_up((n_packed + 1) // 2, 8))
        else:
            tm = min(tm, _round_up(n_packed, 8))
        tm = max(8, tm)

        grid = (pl.cdiv(n_packed, tm),)

        p = self.onehot_packed.astype(x.dtype)

        # Explicit scoped-VMEM budget: double-buffered in+out tiles plus P
        # (v5e's scoped default of 16 MiB would otherwise gate large tiles).
        vmem_bytes = (2 * tm * (src_p + dst_p) * itemsize
                      + 2 * src_p * dst_p * itemsize)
        vmem_limit = int(min(max(vmem_bytes + (4 << 20), 16 << 20), 48 << 20))

        cost = pl.CostEstimate(
            flops=int(2 * n_packed * src_p * dst_p),
            transcendentals=0,
            bytes_accessed=int(
                (n_packed * (src_p + dst_p) + src_p * dst_p) * itemsize
            ),
        )

        out = pl.pallas_call(
            _broadcast_kernel,
            out_shape=jax.ShapeDtypeStruct((n_packed, dst_p), x.dtype),
            grid=grid,
            in_specs=[
                pl.BlockSpec((tm, src_p), lambda i: (i, 0)),
                pl.BlockSpec((src_p, dst_p), lambda i: (0, 0)),  # P stays resident
            ],
            out_specs=pl.BlockSpec((tm, dst_p), lambda i: (i, 0)),
            compiler_params=pltpu.CompilerParams(
                dimension_semantics=("parallel",),
                vmem_limit_bytes=vmem_limit,
            ),
            cost_estimate=cost,
        )(xp, p)

        if self.pad_cols:
            # Rare fallback only: strip the zero lane-padding columns.
            out = out[:, :G * self.dst_dim]
        out = out.reshape(n_rows_g, self.dst_dim)
        if n_rows_g != n_rows:
            out = out[:n_rows]
        return out.reshape(*lead, self.dst_dim)


if __name__ == "__main__":
    key = jax.random.PRNGKey(0)
    lmax, cmax = 3, 2
    k1, k2, k3, k4 = jax.random.split(key, 4)

    # --- lc -> lcm, tiny input (fast path) --------------------------------
    mod_lc = BroadcastGTOTensor(lmax, cmax, src="lc", dst="lcm")
    x_small = jax.random.normal(k1, (2, 4, mod_lc.src_dim), dtype=jnp.float32)
    y_small = jax.block_until_ready(mod_lc(x_small))
    np.testing.assert_allclose(np.asarray(y_small),
                               np.asarray(x_small[..., mod_lc.indices]),
                               rtol=0, atol=0)
    assert y_small.shape == (2, 4, mod_lc.dst_dim)

    # --- lc -> lcm, aligned rows -> Pallas path, 2 grid steps -------------
    x_lc = jax.random.normal(k2, (2, 4, 64, mod_lc.src_dim), dtype=jnp.float32)
    y_lc = jax.block_until_ready(mod_lc(x_lc))
    np.testing.assert_allclose(np.asarray(y_lc),
                               np.asarray(x_lc[..., mod_lc.indices]),
                               rtol=0, atol=0)
    assert y_lc.shape == (2, 4, 64, mod_lc.dst_dim)

    # --- lc -> lcm, misaligned rows -> pad-to-G + masked partial block ----
    x_odd = jax.random.normal(k3, (3, 5, 29, mod_lc.src_dim), dtype=jnp.float32)
    y_odd = jax.block_until_ready(mod_lc(x_odd))
    np.testing.assert_allclose(np.asarray(y_odd),
                               np.asarray(x_odd[..., mod_lc.indices]),
                               rtol=0, atol=0)
    assert y_odd.shape == (3, 5, 29, mod_lc.dst_dim)

    # --- m -> lcm, Pallas path with a partial last block ------------------
    mod_m = BroadcastGTOTensor(lmax, cmax, src="m", dst="lcm")
    x_m = jax.random.normal(k4, (2, 300, mod_m.src_dim), dtype=jnp.float32)
    y_m = jax.block_until_ready(mod_m(x_m))
    np.testing.assert_allclose(np.asarray(y_m),
                               np.asarray(x_m[..., mod_m.indices]),
                               rtol=0, atol=0)
    assert y_m.shape == (2, 300, mod_m.dst_dim)

    print("KERNEL_OK")
</pallas_src>

<mosaic_0001>
module attributes {stable_mosaic.version = 11 : i64} {
  func.func @_broadcast_kernel(%arg0: i32, %arg1: memref<16x128xf32, #tpu.memory_space<vmem>>, %arg2: memref<128x512xf32, #tpu.memory_space<vmem>>, %arg3: memref<16x512xf32, #tpu.memory_space<vmem>>) attributes {dimension_semantics = [#tpu.dimension_semantics<parallel>], iteration_bounds = array<i64: 2>, scalar_prefetch = 0 : i64, scratch_operands = 0 : i64, tpu.core_type = #tpu.core_type<tc>, window_params = [{transform_indices = @transform_0, window_bounds = array<i64: 16, 128>}, {pipeline_mode = #tpu.pipeline_mode<synchronous>, transform_indices = @transform_1, window_bounds = array<i64: 128, 512>}, {transform_indices = @transform_2, window_bounds = array<i64: 16, 512>}]} {
    %c0 = arith.constant 0 : index
    %c0_0 = arith.constant 0 : index
    %0 = vector.load %arg1[%c0, %c0_0] : memref<16x128xf32, #tpu.memory_space<vmem>>, vector<16x128xf32>
    %c0_1 = arith.constant 0 : index
    %c0_2 = arith.constant 0 : index
    %1 = vector.load %arg2[%c0_1, %c0_2] : memref<128x512xf32, #tpu.memory_space<vmem>>, vector<128x512xf32>
    %cst = arith.constant dense<0.000000e+00> : vector<16x512xf32>
    %2 = tpu.matmul %0, %1, %cst {dimension_numbers = #tpu.dot_dimension_numbers<[1], [0], [0], [1], [0, 0, 1, 1], [], []>} : vector<16x128xf32>, vector<128x512xf32>, vector<16x512xf32> -> vector<16x512xf32>
    %c0_3 = arith.constant 0 : index
    %c0_4 = arith.constant 0 : index
    %3 = vector.load %arg3[%c0_3, %c0_4] : memref<16x512xf32, #tpu.memory_space<vmem>>, vector<16x512xf32>
    tpu.vector_store %arg3[%c0_3, %c0_4], %2 {strides = array<i32>} : memref<16x512xf32, #tpu.memory_space<vmem>>, vector<16x512xf32>,
    return
  }
  func.func @transform_0(%arg0: i32) -> (i32, i32) {
    %c0_i32 = arith.constant 0 : i32
    %c0_i32_0 = arith.constant 0 : i32
    return %arg0, %c0_i32 : i32, i32
  }
  func.func @transform_1(%arg0: i32) -> (i32, i32) {
    %c0_i32 = arith.constant 0 : i32
    %c0_i32_0 = arith.constant 0 : i32
    %c0_i32_1 = arith.constant 0 : i32
    return %c0_i32, %c0_i32_0 : i32, i32
  }
  func.func @transform_2(%arg0: i32) -> (i32, i32) {
    %c0_i32 = arith.constant 0 : i32
    %c0_i32_0 = arith.constant 0 : i32
    return %arg0, %c0_i32 : i32, i32
  }
}

</mosaic_0001>

<llo_original>
// kernel: tpu_custom_call.1
$region0: #{tpu_custom_call.1}
  #allocation0 [shape = 'u32[]', space=smem, size = 0x4, offset = 0x4, fixed_abs, tag = 'smem constant byte address 0x4 - core index']
  #allocation1 [shape = 'u32[144,128]{1,0:T(1,128)}', space=vmem, size = 0x12000, scoped, tag = 'internal scratch']
  %s0 = inlined_call_operand.hbm [shape: f32[32,128], index: 0, kind: input, shape index: {}]
  %s1 = inlined_call_operand.hbm [shape: f32[128,512], index: 1, kind: input, shape index: {}]
  %s2 = inlined_call_operand.hbm [shape: f32[32,512], index: 2, kind: output, shape index: {}]
  %s3 = sld [smem:[#allocation0]]
  $region49: #{tpu_custom_call.1} parent=0
    _
  %s5 = ssub.s32 1, %s3
  %s6 = scalar_select 0, %s5, %s3
  $region1: #{tpu_custom_call.1} parent=0
    #allocation2 [shape = 'u8[16384]{0}', space=vmem, size = 0x4000, scoped, tag = 'input window, operand 0']
    #allocation3 [shape = 's32[2]{0}', space=sflag, size = 0x8, scoped, tag = 'scoped memory for tpu_custom_call.1']
    #allocation4 [shape = 's32[2]{0}', space=sflag, size = 0x8, scoped, tag = 'scoped memory for tpu_custom_call.1']
    #allocation5 [shape = 'u8[262144]{0}', space=vmem, size = 0x40000, scoped, tag = 'input window, operand 1, single buffered']
    #allocation6 [shape = 's32[1]{0}', space=sflag, size = 0x4, scoped, tag = 'scoped memory for tpu_custom_call.1']
    #allocation7 [shape = 'u8[65536]{0}', space=vmem, size = 0x10000, scoped, tag = 'output window, operand 0']
    %7 = vsyncpa [#allocation3], 0
    %s8 = scalar_lea.sflag [#allocation3], 1
    %9 = vsyncpa %s8, 0
    %10 = vsyncpa [#allocation6], 0
    %11 = vsyncpa [#allocation4], 0
    %s12 = scalar_lea.sflag [#allocation4], 1
    %13 = vsyncpa %s12, 0
    loop: start=0, step=1, limit=4
    $region2: #{tpu_custom_call.1} parent=1 // loop_pre_header
      _
    $region3: #{tpu_custom_call.1} parent=1 // loop_header
      %s15 = sphi 0, %s19
      %p16 = scmp.ge.s32.totalorder %s15, 4
      %s25 = sphi 0, %s27
      %s28 = sphi 0, %s25
      %s29 = sphi 0, %s28
      %s45 = sphi 0, %s29
      %s49 = sphi 0, %s49
      %s51 = sphi 0, %s49
      %s52 = sphi 0, %s51
      %s66 = sphi 0, %s52
      %s72 = sphi 0, %s74
      %s75 = sphi 0, %s72
      %s76 = sphi 0, %s75
      %s92 = sphi 0, %s76
    $region4: #{tpu_custom_call.1} parent=1 // loop_header_branch
      %18 = sbr.rel (%p16) target = $region8
    $region5: #{tpu_custom_call.1} parent=1 // loop_body
      %s20 = ssub.s32 %s15, 1
      %s21 = ssub.s32 %s15, 2
      %s22 = sadd.s32 %s15, 1
      %s23 = ssub.s32 %s15, %s22
      %p24 = scmp.eq.s32.totalorder %s23, 0
      %s26 = sadd.s32 %s25, 1
      %s27 = scalar_select %p24, %s25, %s26
      %p30 = pneg %p24
      %p31 = scmp.eq.s32.totalorder %s15, 1
      %p32 = por %p30, %p31
      %p33 = scmp.ne.s32.totalorder %s25, %s28
      %p34 = scmp.eq.s32.totalorder %s15, 0
      %p35 = por %p33, %p34
      %p36 = scmp.ne.s32.totalorder %s25, %s28
      %p37 = scmp.eq.s32.totalorder %s20, 1
      %p38 = por %p36, %p37
      %p39 = scmp.ne.s32.totalorder %s28, %s29
      %p40 = scmp.eq.s32.totalorder %s20, 0
      %p41 = por %p39, %p40
      %p42 = scmp.ne.s32.totalorder %s28, %s29
      %p43 = scmp.eq.s32.totalorder %s21, 1
      %p44 = por %p42, %p43
      %p46 = scmp.ne.s32.totalorder %s29, %s45
      %p47 = scmp.eq.s32.totalorder %s21, 0
      %p48 = por %p46, %p47
      %s50 = sadd.s32 %s49, 1
      %p53 = scmp.eq.s32.totalorder %s15, 1
      %p54 = scmp.ne.s32.totalorder %s49, %s51
      %p55 = scmp.eq.s32.totalorder %s15, 0
      %p56 = por %p54, %p55
      %p57 = scmp.ne.s32.totalorder %s49, %s51
      %p58 = scmp.eq.s32.totalorder %s20, 1
      %p59 = por %p57, %p58
      %p60 = scmp.ne.s32.totalorder %s51, %s52
      %p61 = scmp.eq.s32.totalorder %s20, 0
      %p62 = por %p60, %p61
      %p63 = scmp.ne.s32.totalorder %s51, %s52
      %p64 = scmp.eq.s32.totalorder %s21, 1
      %p65 = por %p63, %p64
      %p67 = scmp.ne.s32.totalorder %s52, %s66
      %p68 = scmp.eq.s32.totalorder %s21, 0
      %p69 = por %p67, %p68
      %s70 = ssub.s32 %s15, %s22
      %p71 = scmp.eq.s32.totalorder %s70, 0
      %s73 = sadd.s32 %s72, 1
      %s74 = scalar_select %p71, %s72, %s73
      %p77 = pneg %p71
      %p78 = scmp.eq.s32.totalorder %s15, 1
      %p79 = por %p77, %p78
      %p80 = scmp.ne.s32.totalorder %s72, %s75
      %p81 = scmp.eq.s32.totalorder %s15, 0
      %p82 = por %p80, %p81
      %p83 = scmp.ne.s32.totalorder %s72, %s75
      %p84 = scmp.eq.s32.totalorder %s20, 1
      %p85 = por %p83, %p84
      %p86 = scmp.ne.s32.totalorder %s75, %s76
      %p87 = scmp.eq.s32.totalorder %s20, 0
      %p88 = por %p86, %p87
      %p89 = scmp.ne.s32.totalorder %s75, %s76
      %p90 = scmp.eq.s32.totalorder %s21, 1
      %p91 = por %p89, %p90
      %p93 = scmp.ne.s32.totalorder %s76, %s92
      %p94 = scmp.eq.s32.totalorder %s21, 0
      %p95 = por %p93, %p94
      %p96 = scmp.le.s32.totalorder 1, %s15
      %p97 = scmp.lt.s32.totalorder %s15, 3
      %p98 = pnand %p96, %p97
      %p99 = pneg %p98
      // Predicated region
      $region9: #{tpu_custom_call.1} parent=5 // pred_check
        _
      $region10: #{tpu_custom_call.1} parent=5 // pred_check_branch
        %101 = sbr.rel (%p98) target = $region12
      $region11: #{tpu_custom_call.1} parent=5 // pred_region
        %s102 = ssub.s32 %s15, 1
        // Predicated region
        $region13: #{tpu_custom_call.1} parent=11 // pred_check
          %p103 = pneg %p62
        $region14: #{tpu_custom_call.1} parent=11 // pred_check_branch
          %105 = sbr.rel (%p103) target = $region16
        $region15: #{tpu_custom_call.1} parent=11 // pred_region
          %s107 = ssub.s32 8192, 8192
          %108 = vsyncadd [#allocation6], %s107
          %s109 = sshll.u32 [#allocation5], 4
          %s110 = int_to_ptr.vmem [resolvable:$true] %s109
          %115 = dma.hbm_to_vmem [thread:$0]  %s1, 8192, %s110, [#allocation6], 512, 512, 32
        $region16: #{tpu_custom_call.1} parent=11 // pred_fallthru
          _
      $region12: #{tpu_custom_call.1} parent=5 // pred_fallthru
        _
      %p116 = scmp.lt.s32.totalorder %s15, 2
      // Predicated region
      $region17: #{tpu_custom_call.1} parent=5 // pred_check
        %p117 = pneg %p116
      $region18: #{tpu_custom_call.1} parent=5 // pred_check_branch
        %119 = sbr.rel (%p117) target = $region20
      $region19: #{tpu_custom_call.1} parent=5 // pred_region
        // Predicated region
        $region21: #{tpu_custom_call.1} parent=19 // pred_check
          %p120 = pneg %p35
        $region22: #{tpu_custom_call.1} parent=19 // pred_check_branch
          %122 = sbr.rel (%p120) target = $region24
        $region23: #{tpu_custom_call.1} parent=19 // pred_region
          %s123 = sand.u32 %s25, 1
          %s124 = scalar_lea.sflag [#allocation3], %s123
          %s125 = sand.u32 %s25, 1
          %s126 = smul.addr %s125, 16
          %s127 = scalar_lea.vmem [#allocation2], %s126
          %s128 = smul.u32 2, %s15
          %s130 = ssub.s32 256, 256
          %131 = vsyncadd %s124, %s130
          %s132 = smul.addr %s128, 128
          %s133 = scalar_lea.hbm %s0, %s132
          %s134 = sshll.u32 %s127, 4
          %s135 = int_to_ptr.vmem [resolvable:$true] %s134
          %140 = dma.hbm_to_vmem [thread:$0]  %s133, 256, %s135, %s124, 128, 128, 8
        $region24: #{tpu_custom_call.1} parent=19 // pred_fallthru
          _
      $region20: #{tpu_custom_call.1} parent=5 // pred_fallthru
        _
      %p141 = scmp.le.s32.totalorder 1, %s15
      %p142 = scmp.lt.s32.totalorder %s15, 3
      %p143 = pnand %p141, %p142
      %p144 = pneg %p143
      // Predicated region
      $region25: #{tpu_custom_call.1} parent=5 // pred_check
        _
      $region26: #{tpu_custom_call.1} parent=5 // pred_check_branch
        %146 = sbr.rel (%p143) target = $region28
      $region27: #{tpu_custom_call.1} parent=5 // pred_region
        %s147 = ssub.s32 %s15, 1
        %s148 = sand.u32 %s28, 1
        %s149 = scalar_lea.sflag [#allocation3], %s148
        %s150 = sand.u32 %s28, 1
        %s151 = smul.addr %s150, 16
        %s152 = scalar_lea.vmem [#allocation2], %s151
        // Predicated region
        $region29: #{tpu_custom_call.1} parent=27 // pred_check
          %p153 = pneg %p41
        $region30: #{tpu_custom_call.1} parent=27 // pred_check_branch
          %155 = sbr.rel (%p153) target = $region32
        $region31: #{tpu_custom_call.1} parent=27 // pred_region
          %156 = dma.done %s149, 256
        $region32: #{tpu_custom_call.1} parent=27 // pred_fallthru
          _
        // Predicated region
        $region33: #{tpu_custom_call.1} parent=27 // pred_check
          %p157 = pneg %p62
        $region34: #{tpu_custom_call.1} parent=27 // pred_check_branch
          %159 = sbr.rel (%p157) target = $region36
        $region35: #{tpu_custom_call.1} parent=27 // pred_region
          %160 = dma.done [#allocation6], 8192
        $region36: #{tpu_custom_call.1} parent=27 // pred_fallthru
          _
        %s161 = sand.u32 %s28, 1
        %s162 = scalar_lea.sflag [#allocation3], %s161
        %s163 = sand.u32 %s28, 1
        %s164 = smul.addr %s163, 16
        %s165 = scalar_lea.vmem [#allocation2], %s164
        %p166 = pneg %p41
        %p167 = pneg %p38
        %p168 = pneg %p62
        %p169 = pneg %p59
        %p170 = pneg %p88
        %p171 = pneg %p85
        %s172 = sand.u32 %s75, 1
        %s173 = scalar_lea.sflag [#allocation4], %s172
        %s174 = sand.u32 %s75, 1
        %s175 = smul.addr %s174, 64
        %s176 = scalar_lea.vmem [#allocation7], %s175
        %s177 = smul.u32 2, %s20
        %s178 = smul.u32 2, %s20
        %v179 = vld [vmem:[%s152] sm:$0xff]
        %v180 = vld [vmem:[%s152 + $0x8] sm:$0xff]
        %v181 = vld [vmem:[#allocation5] sm:$0xff]
        %v182 = vld [vmem:[#allocation5 + $0x8] sm:$0xff]
        %v183 = vld [vmem:[#allocation5 + $0x10] sm:$0xff]
        %v184 = vld [vmem:[#allocation5 + $0x18] sm:$0xff]
        %v185 = vld [vmem:[#allocation5 + $0x20] sm:$0xff]
        %v186 = vld [vmem:[#allocation5 + $0x28] sm:$0xff]
        %v187 = vld [vmem:[#allocation5 + $0x30] sm:$0xff]
        %v188 = vld [vmem:[#allocation5 + $0x38] sm:$0xff]
        %v189 = vld [vmem:[#allocation5 + $0x40] sm:$0xff]
        %v190 = vld [vmem:[#allocation5 + $0x48] sm:$0xff]
        %v191 = vld [vmem:[#allocation5 + $0x50] sm:$0xff]
        %v192 = vld [vmem:[#allocation5 + $0x58] sm:$0xff]
        %v193 = vld [vmem:[#allocation5 + $0x60] sm:$0xff]
        %v194 = vld [vmem:[#allocation5 + $0x68] sm:$0xff]
        %v195 = vld [vmem:[#allocation5 + $0x70] sm:$0xff]
        %v196 = vld [vmem:[#allocation5 + $0x78] sm:$0xff]
        %v197 = vld [vmem:[#allocation5 + $0x80] sm:$0xff]
        %v198 = vld [vmem:[#allocation5 + $0x88] sm:$0xff]
        %v199 = vld [vmem:[#allocation5 + $0x90] sm:$0xff]
        %v200 = vld [vmem:[#allocation5 + $0x98] sm:$0xff]
        %v201 = vld [vmem:[#allocation5 + $0xa0] sm:$0xff]
        %v202 = vld [vmem:[#allocation5 + $0xa8] sm:$0xff]
        %v203 = vld [vmem:[#allocation5 + $0xb0] sm:$0xff]
        %v204 = vld [vmem:[#allocation5 + $0xb8] sm:$0xff]
        %v205 = vld [vmem:[#allocation5 + $0xc0] sm:$0xff]
        %v206 = vld [vmem:[#allocation5 + $0xc8] sm:$0xff]
        %v207 = vld [vmem:[#allocation5 + $0xd0] sm:$0xff]
        %v208 = vld [vmem:[#allocation5 + $0xd8] sm:$0xff]
        %v209 = vld [vmem:[#allocation5 + $0xe0] sm:$0xff]
        %v210 = vld [vmem:[#allocation5 + $0xe8] sm:$0xff]
        %v211 = vld [vmem:[#allocation5 + $0xf0] sm:$0xff]
        %v212 = vld [vmem:[#allocation5 + $0xf8] sm:$0xff]
        %v213 = vld [vmem:[#allocation5 + $0x100] sm:$0xff]
        %v214 = vld [vmem:[#allocation5 + $0x108] sm:$0xff]
        %v215 = vld [vmem:[#allocation5 + $0x110] sm:$0xff]
        %v216 = vld [vmem:[#allocation5 + $0x118] sm:$0xff]
        %v217 = vld [vmem:[#allocation5 + $0x120] sm:$0xff]
        %v218 = vld [vmem:[#allocation5 + $0x128] sm:$0xff]
        %v219 = vld [vmem:[#allocation5 + $0x130] sm:$0xff]
        %v220 = vld [vmem:[#allocation5 + $0x138] sm:$0xff]
        %v221 = vld [vmem:[#allocation5 + $0x140] sm:$0xff]
        %v222 = vld [vmem:[#allocation5 + $0x148] sm:$0xff]
        %v223 = vld [vmem:[#allocation5 + $0x150] sm:$0xff]
        %v224 = vld [vmem:[#allocation5 + $0x158] sm:$0xff]
        %v225 = vld [vmem:[#allocation5 + $0x160] sm:$0xff]
        %v226 = vld [vmem:[#allocation5 + $0x168] sm:$0xff]
        %v227 = vld [vmem:[#allocation5 + $0x170] sm:$0xff]
        %v228 = vld [vmem:[#allocation5 + $0x178] sm:$0xff]
        %v229 = vld [vmem:[#allocation5 + $0x180] sm:$0xff]
        %v230 = vld [vmem:[#allocation5 + $0x188] sm:$0xff]
        %v231 = vld [vmem:[#allocation5 + $0x190] sm:$0xff]
        %v232 = vld [vmem:[#allocation5 + $0x198] sm:$0xff]
        %v233 = vld [vmem:[#allocation5 + $0x1a0] sm:$0xff]
        %v234 = vld [vmem:[#allocation5 + $0x1a8] sm:$0xff]
        %v235 = vld [vmem:[#allocation5 + $0x1b0] sm:$0xff]
        %v236 = vld [vmem:[#allocation5 + $0x1b8] sm:$0xff]
        %v237 = vld [vmem:[#allocation5 + $0x1c0] sm:$0xff]
        %v238 = vld [vmem:[#allocation5 + $0x1c8] sm:$0xff]
        %v239 = vld [vmem:[#allocation5 + $0x1d0] sm:$0xff]
        %v240 = vld [vmem:[#allocation5 + $0x1d8] sm:$0xff]
        %v241 = vld [vmem:[#allocation5 + $0x1e0] sm:$0xff]
        %v242 = vld [vmem:[#allocation5 + $0x1e8] sm:$0xff]
        %v243 = vld [vmem:[#allocation5 + $0x1f0] sm:$0xff]
        %v244 = vld [vmem:[#allocation5 + $0x1f8] sm:$0xff]
        %245 = vmatprep.subr.mxu0 %v182
        %246 = vmatpush1.msra.mxu0 %v181
        %247 = vmatprep.subr.mxu0 %v186
        %248 = vmatpush1.msra.mxu0 %v185
        %249 = vmatprep.subr.mxu0 %v190
        %250 = vmatpush1.msra.mxu0 %v189
        %251 = vmatprep.subr.mxu0 %v194
        %252 = vmatpush1.msra.mxu0 %v193
        %253 = vmatprep.subr.mxu0 %v198
        %254 = vmatpush1.msra.mxu0 %v197
        %255 = vmatprep.subr.mxu0 %v202
        %256 = vmatpush1.msra.mxu0 %v201
        %257 = vmatprep.subr.mxu0 %v206
        %258 = vmatpush1.msra.mxu0 %v205
        %259 = vmatprep.subr.mxu0 %v210
        %260 = vmatpush1.msra.mxu0 %v209
        %261 = vmatprep.subr.mxu0 %v214
        %262 = vmatpush1.msra.mxu0 %v213
        %263 = vmatprep.subr.mxu0 %v218
        %264 = vmatpush1.msra.mxu0 %v217
        %265 = vmatprep.subr.mxu0 %v222
        %266 = vmatpush1.msra.mxu0 %v221
        %267 = vmatprep.subr.mxu0 %v226
        %268 = vmatpush1.msra.mxu0 %v225
        %269 = vmatprep.subr.mxu0 %v230
        %270 = vmatpush1.msra.mxu0 %v229
        %271 = vmatprep.subr.mxu0 %v234
        %272 = vmatpush1.msra.mxu0 %v233
        %273 = vmatprep.subr.mxu0 %v238
        %274 = vmatpush1.msra.mxu0 %v237
        %275 = vmatprep.subr.mxu0 %v242
        %276 = vmatpush1.msra.mxu0 %v241
        %277 = vmatprep.subr.mxu0 0.0
        %278 = vmatpush1.msra.mxu0 0.0
        %279 = vmatprep.subr.mxu0 0.0
        %280 = vmatpush1.msra.mxu0 0.0
        %281 = vmatprep.subr.mxu0 0.0
        %282 = vmatpush1.msra.mxu0 0.0
        %283 = vmatprep.subr.mxu0 0.0
        %284 = vmatpush1.msra.mxu0 0.0
        %285 = vmatprep.subr.mxu0 0.0
        %286 = vmatpush1.msra.mxu0 0.0
        %287 = vmatprep.subr.mxu0 0.0
        %288 = vmatpush1.msra.mxu0 0.0
        %289 = vmatprep.subr.mxu0 0.0
        %290 = vmatpush1.msra.mxu0 0.0
        %291 = vmatprep.subr.mxu0 0.0
        %292 = vmatpush1.msra.mxu0 0.0
        %293 = vmatprep.subr.mxu0 0.0
        %294 = vmatpush1.msra.mxu0 0.0
        %295 = vmatprep.subr.mxu0 0.0
        %296 = vmatpush1.msra.mxu0 0.0
        %297 = vmatprep.subr.mxu0 0.0
        %298 = vmatpush1.msra.mxu0 0.0
        %299 = vmatprep.subr.mxu0 0.0
        %300 = vmatpush1.msra.mxu0 0.0
        %301 = vmatprep.subr.mxu0 0.0
        %302 = vmatpush1.msra.mxu0 0.0
        %303 = vmatprep.subr.mxu0 0.0
        %304 = vmatpush1.msra.mxu0 0.0
        %305 = vmatprep.subr.mxu0 0.0
        %306 = vmatpush1.msra.mxu0 0.0
        %307 = vmatprep.subr.mxu0 0.0
        %308 = vmatpush1.msra.mxu0 0.0
        %309 = vmatprep.mubr.f32.mxu0 0.0
        %310 = vmatmul.mubr.f32.gmra.mrb[0].mxu0 %v179
        %v311 = vpop.f32.mrb[0].mxu0
        %v312 = vadd.f32 0.0, %v311
        %v313 = vpop.f32.mrb[0].mxu0
        %v314 = vadd.f32 0.0, %v313
        %315 = vmatprep.mubr.f32.mxu0 0.0
        %316 = vmatmul.mubr.f32.gmra.mrb[0].mxu0 %v180
        %v317 = vpop.f32.mrb[0].mxu0
        %v318 = vadd.f32 0.0, %v317
        %v319 = vpop.f32.mrb[0].mxu0
        %v320 = vadd.f32 0.0, %v319
        %321 = vdwg.mxu0
        %322 = vmatprep.subr.mxu0 %v184
        %323 = vmatpush1.msra.mxu0 %v183
        %324 = vmatprep.subr.mxu0 %v188
        %325 = vmatpush1.msra.mxu0 %v187
        %326 = vmatprep.subr.mxu0 %v192
        %327 = vmatpush1.msra.mxu0 %v191
        %328 = vmatprep.subr.mxu0 %v196
        %329 = vmatpush1.msra.mxu0 %v195
        %330 = vmatprep.subr.mxu0 %v200
        %331 = vmatpush1.msra.mxu0 %v199
        %332 = vmatprep.subr.mxu0 %v204
        %333 = vmatpush1.msra.mxu0 %v203
        %334 = vmatprep.subr.mxu0 %v208
        %335 = vmatpush1.msra.mxu0 %v207
        %336 = vmatprep.subr.mxu0 %v212
        %337 = vmatpush1.msra.mxu0 %v211
        %338 = vmatprep.subr.mxu0 %v216
        %339 = vmatpush1.msra.mxu0 %v215
        %340 = vmatprep.subr.mxu0 %v220
        %341 = vmatpush1.msra.mxu0 %v219
        %342 = vmatprep.subr.mxu0 %v224
        %343 = vmatpush1.msra.mxu0 %v223
        %344 = vmatprep.subr.mxu0 %v228
        %345 = vmatpush1.msra.mxu0 %v227
        %346 = vmatprep.subr.mxu0 %v232
        %347 = vmatpush1.msra.mxu0 %v231
        %348 = vmatprep.subr.mxu0 %v236
        %349 = vmatpush1.msra.mxu0 %v235
        %350 = vmatprep.subr.mxu0 %v240
        %351 = vmatpush1.msra.mxu0 %v239
        %352 = vmatprep.subr.mxu0 %v244
        %353 = vmatpush1.msra.mxu0 %v243
        %354 = vmatprep.subr.mxu0 0.0
        %355 = vmatpush1.msra.mxu0 0.0
        %356 = vmatprep.subr.mxu0 0.0
        %357 = vmatpush1.msra.mxu0 0.0
        %358 = vmatprep.subr.mxu0 0.0
        %359 = vmatpush1.msra.mxu0 0.0
        %360 = vmatprep.subr.mxu0 0.0
        %361 = vmatpush1.msra.mxu0 0.0
        %362 = vmatprep.subr.mxu0 0.0
        %363 = vmatpush1.msra.mxu0 0.0
        %364 = vmatprep.subr.mxu0 0.0
        %365 = vmatpush1.msra.mxu0 0.0
        %366 = vmatprep.subr.mxu0 0.0
        %367 = vmatpush1.msra.mxu0 0.0
        %368 = vmatprep.subr.mxu0 0.0
        %369 = vmatpush1.msra.mxu0 0.0
        %370 = vmatprep.subr.mxu0 0.0
        %371 = vmatpush1.msra.mxu0 0.0
        %372 = vmatprep.subr.mxu0 0.0
        %373 = vmatpush1.msra.mxu0 0.0
        %374 = vmatprep.subr.mxu0 0.0
        %375 = vmatpush1.msra.mxu0 0.0
        %376 = vmatprep.subr.mxu0 0.0
        %377 = vmatpush1.msra.mxu0 0.0
        %378 = vmatprep.subr.mxu0 0.0
        %379 = vmatpush1.msra.mxu0 0.0
        %380 = vmatprep.subr.mxu0 0.0
        %381 = vmatpush1.msra.mxu0 0.0
        %382 = vmatprep.subr.mxu0 0.0
        %383 = vmatpush1.msra.mxu0 0.0
        %384 = vmatprep.subr.mxu0 0.0
        %385 = vmatpush1.msra.mxu0 0.0
        %386 = vmatprep.mubr.f32.mxu0 0.0
        %387 = vmatmul.mubr.f32.gmra.mrb[0].mxu0 %v179
        %v388 = vpop.f32.mrb[0].mxu0
        %v389 = vadd.f32 0.0, %v388
        %v390 = vpop.f32.mrb[0].mxu0
        %v391 = vadd.f32 0.0, %v390
        %392 = vmatprep.mubr.f32.mxu0 0.0
        %393 = vmatmul.mubr.f32.gmra.mrb[0].mxu0 %v180
        %v394 = vpop.f32.mrb[0].mxu0
        %v395 = vadd.f32 0.0, %v394
        %v396 = vpop.f32.mrb[0].mxu0
        %v397 = vadd.f32 0.0, %v396
        %398 = vdwg.mxu0
        %399 = vst [vmem:[%s176] sm:$0xff] %v312
        %400 = vst [vmem:[%s176 + $0x8] sm:$0xff] %v314
        %401 = vst [vmem:[%s176 + $0x10] sm:$0xff] %v389
        %402 = vst [vmem:[%s176 + $0x18] sm:$0xff] %v391
        %403 = vst [vmem:[%s176 + $0x20] sm:$0xff] %v318
        %404 = vst [vmem:[%s176 + $0x28] sm:$0xff] %v320
        %405 = vst [vmem:[%s176 + $0x30] sm:$0xff] %v395
        %406 = vst [vmem:[%s176 + $0x38] sm:$0xff] %v397
        %s407 = sand.u32 %s75, 1
        %s408 = scalar_lea.sflag [#allocation4], %s407
        %s409 = sand.u32 %s75, 1
        %s410 = smul.addr %s409, 64
        %s411 = scalar_lea.vmem [#allocation7], %s410
        // Predicated region
        $region37: #{tpu_custom_call.1} parent=27 // pred_check
          %p412 = pneg %p85
        $region38: #{tpu_custom_call.1} parent=27 // pred_check_branch
          %414 = sbr.rel (%p412) target = $region40
        $region39: #{tpu_custom_call.1} parent=27 // pred_region
          %s415 = smul.u32 2, %s20
          %s417 = ssub.s32 1024, 1024
          %418 = vsyncadd %s408, %s417
          %s419 = smul.addr %s415, 4
          %s420 = smul.addr %s419, 128
          %s421 = scalar_lea.hbm %s2, %s420
          %s422 = sshll.u32 %s411, 4
          %s423 = int_to_ptr.vmem [resolvable:$true] %s422
          %428 = dma.vmem_to_hbm [thread:$0]  %s423, 1024, %s421, %s408, 512, 512, 32
        $region40: #{tpu_custom_call.1} parent=27 // pred_fallthru
          _
      $region28: #{tpu_custom_call.1} parent=5 // pred_fallthru
        _
      %p429 = scmp.le.s32.totalorder 2, %s15
      // Predicated region
      $region41: #{tpu_custom_call.1} parent=5 // pred_check
        %p430 = pneg %p429
      $region42: #{tpu_custom_call.1} parent=5 // pred_check_branch
        %432 = sbr.rel (%p430) target = $region44
      $region43: #{tpu_custom_call.1} parent=5 // pred_region
        %s433 = ssub.s32 %s15, 2
        // Predicated region
        $region45: #{tpu_custom_call.1} parent=43 // pred_check
          %p434 = pneg %p91
        $region46: #{tpu_custom_call.1} parent=43 // pred_check_branch
          %436 = sbr.rel (%p434) target = $region48
        $region47: #{tpu_custom_call.1} parent=43 // pred_region
          %s437 = sand.u32 %s76, 1
          %s438 = scalar_lea.sflag [#allocation4], %s437
          %s439 = sand.u32 %s76, 1
          %s440 = smul.addr %s439, 64
          %s441 = scalar_lea.vmem [#allocation7], %s440
          %442 = dma.done %s438, 1024
        $region48: #{tpu_custom_call.1} parent=43 // pred_fallthru
          _
      $region44: #{tpu_custom_call.1} parent=5 // pred_fallthru
        _
    $region6: #{tpu_custom_call.1} parent=1 // loop_footer
      %s19 = sadd.s32 1, %s15
    $region7: #{tpu_custom_call.1} parent=1 // loop_footer_branch
      %14 = sbr.rel target = $region3
    $region8: #{tpu_custom_call.1} parent=1 // loop_exit
      _
    %443 = vsyncpa [#allocation3], 1
    %s444 = scalar_lea.sflag [#allocation3], 1
    %445 = vsyncpa %s444, 1
    %446 = vsyncpa [#allocation6], 1
    %447 = vsyncpa [#allocation4], 1
    %s448 = scalar_lea.sflag [#allocation4], 1
    %449 = vsyncpa %s448, 1

</llo_original>
